<compile_context>
chip_gen: v5e
topology: v5e:2x2
jax: 0.10.0
libtpu: 0.0.40
codegen_flags: <defaults>
</compile_context>

<pallas_src>
import functools

import jax
import jax.numpy as jnp
from jax import lax
from jax.experimental import pallas as pl
from jax.experimental.pallas import tpu as pltpu


# --------------------------------------------------------------------------
# Generation-aware budgets & tiling helpers
# --------------------------------------------------------------------------

def _hw_budgets():
    """Return (vmem_limit_bytes, default_block_target_bytes) for this chip."""
    try:
        cap = int(pltpu.get_tpu_info().vmem_capacity_bytes)
    except Exception:
        cap = 64 * 1024 * 1024                      # conservative: v7x per-TC VMEM
    vmem_limit = max(32 * 1024 * 1024, min(int(cap * 0.75), 100 * 1024 * 1024))
    block_target = (10 * 1024 * 1024 if cap >= 100 * 1024 * 1024   # v5e / v6e
                    else 6 * 1024 * 1024)                          # v7x / unknown
    return vmem_limit, block_target


def _compiler_params(dimension_semantics, vmem_limit_bytes):
    return pltpu.CompilerParams(
        dimension_semantics=dimension_semantics,
        vmem_limit_bytes=int(vmem_limit_bytes),
    )


def _sublane_quantum(dtype):
    """Native packed sublane tile for the dtype (8 f32 / 16 bf16 / 32 int8)."""
    return {4: 8, 2: 16, 1: 32}.get(jnp.dtype(dtype).itemsize, 8)


def _channel_tile_candidates(c, quantum):
    """Channel tiles dividing c that are legal (multiple of 8, or c itself),
    preferring multiples of the dtype-native sublane quantum."""
    if c % quantum == 0:
        q = quantum
    elif c % 8 == 0:
        q = 8
    else:
        return [c]
    return [q * k for k in range(1, c // q + 1) if c % (q * k) == 0]


def _largest_divisor_tile(total, quantum, max_elems):
    best = quantum
    for k in range(1, total // quantum + 1):
        cand = quantum * k
        if cand <= max_elems and total % cand == 0:
            best = cand
    return best


def _choose_tiles(n, c, hw, itemsize, block_target_bytes, quantum):
    """(tn, tc, hw_tile) for the gridded 2-pass path."""
    work = max(int(itemsize), 4)                    # f32 compute copy dominates
    cands = [t for t in _channel_tile_candidates(c, quantum) if t <= 256]
    tc = max(cands) if cands else c
    # Keep >=2 channel-grid steps when it is free (v7x megacore sharding).
    if tc == c and (c // 2) in cands:
        tc = c // 2
    # Spatial tile: multiple of 128 (or the full extent).
    max_hw = max(128, block_target_bytes // max(1, tc * work))
    if hw <= max_hw:
        hw_tile = hw                                # full extent: always legal
    elif hw % 128 == 0:
        hw_tile = _largest_divisor_tile(hw, 128, max_hw)
    else:
        hw_tile = max(128, (max_hw // 128) * 128)   # ragged -> cdiv grid + mask
    # Batch tile: divides N so reduction blocks carry no padding.
    max_tn = max(1, block_target_bytes // max(1, tc * hw_tile * work))
    tn = 1
    for cand in range(1, n + 1):
        if n % cand == 0 and cand <= max_tn:
            tn = cand
    return tn, tc, hw_tile


def _fused_channel_tile(n, c, hw, itemsize, quantum, vmem_limit, slab_cap):
    """Largest channel tile whose fused 1-pass working set fits VMEM, or None."""
    budget = int(vmem_limit * 0.85)

    def fits(tc):
        blk = n * tc * hw * itemsize                # x block (== output block)
        foot = 4 * blk + 16 * tc * hw               # 2x in + 2x out + f32 slice temps
        if foot > budget:
            return False
        if slab_cap is not None and blk > slab_cap:
            return False
        return True

    cands = [t for t in _channel_tile_candidates(c, quantum) if fits(t)]
    if not cands:
        return None
    tc = max(cands)
    if tc == c and (c // 2) in cands:               # give both v7x TCs work
        tc = c // 2
    return tc


# --------------------------------------------------------------------------
# Kernels
# --------------------------------------------------------------------------

def _bn_fused_kernel(x_ref, w_ref, b_ref, off_ref, o_ref, mean_ref, var_ref,
                     *, eps, count, unroll):
    """1R+1W path over a whole (N, tc, H*W) slab.

    Loops over the N axis so f32 temporaries are O(tc*HW).  Variance uses a
    shifted sum/sumsq (offset = first element per channel) for stability."""
    n = x_ref.shape[0]
    off = off_ref[...]                                        # (tc, 1) f32
    inv_count = 1.0 / count

    def stats_body(i, carry):
        s, sq = carry
        d = x_ref[i].astype(jnp.float32) - off                # (tc, HW)
        s = s + jnp.sum(d, axis=-1, keepdims=True)
        sq = sq + jnp.sum(d * d, axis=-1, keepdims=True)
        return s, sq

    zero = jnp.zeros(off.shape, jnp.float32)
    s, sq = lax.fori_loop(0, n, stats_body, (zero, zero), unroll=unroll)

    dm = s * inv_count
    mean = off + dm
    var = jnp.maximum(sq * inv_count - dm * dm, 0.0)          # biased (correction=0)
    inv_std = lax.rsqrt(var + eps)
    scale = w_ref[...] * inv_std                              # folded affine
    shift = b_ref[...] - mean * scale

    def affine_body(i, carry):
        xi = x_ref[i].astype(jnp.float32)
        o_ref[i] = (xi * scale + shift).astype(o_ref.dtype)
        return carry

    lax.fori_loop(0, n, affine_body, 0, unroll=unroll)

    mean_ref[...] = mean
    var_ref[...] = var


def _bn_stats_kernel(x_ref, off_ref, mean_ref, var_ref,
                     *, count, hw, hw_tile, ragged):
    """Pass 1: accumulate shifted per-channel sum / sumsq across batch & spatial."""
    ni = pl.program_id(1)
    hi = pl.program_id(2)

    @pl.when((ni == 0) & (hi == 0))
    def _init():
        mean_ref[...] = jnp.zeros_like(mean_ref)
        var_ref[...] = jnp.zeros_like(var_ref)

    off = off_ref[...]                                        # (tc, 1)
    d = x_ref[...].astype(jnp.float32) - off[None, :, :]      # (tn, tc, hw_tile)
    if ragged:
        # Mask padded lanes of the trailing (partial) spatial block.
        lane = lax.broadcasted_iota(jnp.int32, d.shape[1:], 1)  # (tc, hw_tile)
        valid = (hi * hw_tile + lane) < hw
        d = jnp.where(valid[None, :, :], d, 0.0)
    ds_ = jnp.sum(d, axis=0)                                  # cheap vreg adds over N
    dq = jnp.sum(d * d, axis=0)
    mean_ref[...] += jnp.sum(ds_, axis=-1, keepdims=True)     # running shifted sum
    var_ref[...] += jnp.sum(dq, axis=-1, keepdims=True)       # running shifted sumsq

    @pl.when((ni == pl.num_programs(1) - 1) & (hi == pl.num_programs(2) - 1))
    def _finalize():
        inv_count = 1.0 / count
        dm = mean_ref[...] * inv_count
        var = jnp.maximum(var_ref[...] * inv_count - dm * dm, 0.0)
        mean_ref[...] = off_ref[...] + dm
        var_ref[...] = var


def _bn_norm_kernel(x_ref, scale_ref, shift_ref, o_ref):
    """Pass 2 / eval mode: y = x * scale + shift with per-channel scale/shift."""
    x = x_ref[...].astype(jnp.float32)                        # (tn, tc, hw_tile)
    o_ref[...] = (x * scale_ref[...][None, :, :]
                  + shift_ref[...][None, :, :]).astype(o_ref.dtype)


# --------------------------------------------------------------------------
# pallas_call wrappers
# --------------------------------------------------------------------------

def _fused_call(x3, w_col, b_col, off_col, tc, eps, count, vmem_limit):
    n, c, hw = x3.shape
    unroll = bool(n <= 8)
    kernel = functools.partial(_bn_fused_kernel, eps=float(eps),
                               count=float(count), unroll=unroll)
    nbytes = n * c * hw * jnp.dtype(x3.dtype).itemsize
    cost = pl.CostEstimate(flops=int(7 * n * c * hw), transcendentals=int(c),
                           bytes_accessed=int(2 * nbytes + 24 * c))
    return pl.pallas_call(
        kernel,
        out_shape=(
            jax.ShapeDtypeStruct((n, c, hw), x3.dtype),
            jax.ShapeDtypeStruct((c, 1), jnp.float32),
            jax.ShapeDtypeStruct((c, 1), jnp.float32),
        ),
        grid=(c // tc,),
        in_specs=[
            pl.BlockSpec((n, tc, hw), lambda ci: (0, ci, 0)),
            pl.BlockSpec((tc, 1), lambda ci: (ci, 0)),
            pl.BlockSpec((tc, 1), lambda ci: (ci, 0)),
            pl.BlockSpec((tc, 1), lambda ci: (ci, 0)),
        ],
        out_specs=(
            pl.BlockSpec((n, tc, hw), lambda ci: (0, ci, 0)),
            pl.BlockSpec((tc, 1), lambda ci: (ci, 0)),
            pl.BlockSpec((tc, 1), lambda ci: (ci, 0)),
        ),
        compiler_params=_compiler_params(("parallel",), vmem_limit),
        cost_estimate=cost,
    )(x3, w_col, b_col, off_col)


def _stats_call(x3, off_col, tn, tc, hw_tile, count, vmem_limit):
    n, c, hw = x3.shape
    ragged = (hw % hw_tile) != 0
    kernel = functools.partial(_bn_stats_kernel, count=float(count),
                               hw=hw, hw_tile=hw_tile, ragged=ragged)
    nbytes = n * c * hw * jnp.dtype(x3.dtype).itemsize
    cost = pl.CostEstimate(flops=int(5 * n * c * hw), transcendentals=0,
                           bytes_accessed=int(nbytes + 12 * c))
    return pl.pallas_call(
        kernel,
        out_shape=(
            jax.ShapeDtypeStruct((c, 1), jnp.float32),
            jax.ShapeDtypeStruct((c, 1), jnp.float32),
        ),
        grid=(c // tc, n // tn, pl.cdiv(hw, hw_tile)),
        in_specs=[
            pl.BlockSpec((tn, tc, hw_tile), lambda ci, ni, hi: (ni, ci, hi)),
            pl.BlockSpec((tc, 1), lambda ci, ni, hi: (ci, 0)),
        ],
        out_specs=(
            pl.BlockSpec((tc, 1), lambda ci, ni, hi: (ci, 0)),
            pl.BlockSpec((tc, 1), lambda ci, ni, hi: (ci, 0)),
        ),
        compiler_params=_compiler_params(("parallel", "arbitrary", "arbitrary"),
                                         vmem_limit),
        cost_estimate=cost,
    )(x3, off_col)


def _normalize_call(x3, scale_col, shift_col, tn, tc, hw_tile, vmem_limit):
    n, c, hw = x3.shape
    nbytes = n * c * hw * jnp.dtype(x3.dtype).itemsize
    cost = pl.CostEstimate(flops=int(2 * n * c * hw), transcendentals=0,
                           bytes_accessed=int(2 * nbytes + 8 * c))
    return pl.pallas_call(
        _bn_norm_kernel,
        out_shape=jax.ShapeDtypeStruct((n, c, hw), x3.dtype),
        grid=(c // tc, n // tn, pl.cdiv(hw, hw_tile)),
        in_specs=[
            pl.BlockSpec((tn, tc, hw_tile), lambda ci, ni, hi: (ni, ci, hi)),
            pl.BlockSpec((tc, 1), lambda ci, ni, hi: (ci, 0)),
            pl.BlockSpec((tc, 1), lambda ci, ni, hi: (ci, 0)),
        ],
        out_specs=pl.BlockSpec((tn, tc, hw_tile), lambda ci, ni, hi: (ni, ci, hi)),
        compiler_params=_compiler_params(("parallel", "parallel", "parallel"),
                                         vmem_limit),
        cost_estimate=cost,
    )(x3, scale_col, shift_col)


# --------------------------------------------------------------------------
# Forward pass matching the PyTorch module
# --------------------------------------------------------------------------

def batchnorm2d_forward(x, weight, bias, running_mean, running_var,
                        num_batches_tracked=None, *, eps=1e-5, momentum=0.1,
                        training=True, block_target_bytes=None,
                        fused_slab_bytes=None):
    """BatchNorm2d forward. x: (N, C, H, W).

    Returns (out, new_running_mean, new_running_var, new_num_batches_tracked).
    """
    n, c, h, w = x.shape
    hw = h * w
    count = n * hw
    itemsize = jnp.dtype(x.dtype).itemsize
    quantum = _sublane_quantum(x.dtype)

    vmem_limit, default_block_target = _hw_budgets()
    if block_target_bytes is None:
        block_target_bytes = default_block_target

    # Free reshape (NCHW is contiguous as (N, C, H*W)) -- no HBM transpose.
    x3 = x.reshape(n, c, hw)
    w_col = weight.astype(jnp.float32).reshape(c, 1)
    b_col = bias.astype(jnp.float32).reshape(c, 1)
    # Per-channel shift (first element of each channel) for stable variance.
    off_col = x3[0, :, 0:1].astype(jnp.float32)

    tn, tc, hw_tile = _choose_tiles(n, c, hw, itemsize, block_target_bytes, quantum)

    if training:
        tc_f = _fused_channel_tile(n, c, hw, itemsize, quantum, vmem_limit,
                                   fused_slab_bytes)
        if tc_f is not None:
            # Whole per-channel slab fits VMEM: single 1R+1W pass.
            out3, mean_col, var_col = _fused_call(
                x3, w_col, b_col, off_col, tc_f, eps, count, vmem_limit)
        else:
            # Gridded 2R+1W: stats reduction pass + folded-affine normalize pass.
            mean_col, var_col = _stats_call(
                x3, off_col, tn, tc, hw_tile, count, vmem_limit)
            inv_std = lax.rsqrt(var_col + eps)
            scale = w_col * inv_std
            shift = b_col - mean_col * scale
            out3 = _normalize_call(x3, scale, shift, tn, tc, hw_tile, vmem_limit)

        batch_mean = mean_col.reshape(c)
        batch_var = var_col.reshape(c)
        # Module semantics: running_var updated with the *biased* batch variance.
        new_running_mean = ((1.0 - momentum) * running_mean
                            + momentum * batch_mean.astype(running_mean.dtype))
        new_running_var = ((1.0 - momentum) * running_var
                           + momentum * batch_var.astype(running_var.dtype))
        new_nbt = None if num_batches_tracked is None else num_batches_tracked + 1
    else:
        # Eval mode: normalize with running statistics (single 1R+1W pass).
        rm_col = running_mean.astype(jnp.float32).reshape(c, 1)
        rv_col = running_var.astype(jnp.float32).reshape(c, 1)
        inv_std = lax.rsqrt(rv_col + eps)
        scale = w_col * inv_std
        shift = b_col - rm_col * scale
        out3 = _normalize_call(x3, scale, shift, tn, tc, hw_tile, vmem_limit)
        new_running_mean = running_mean
        new_running_var = running_var
        new_nbt = num_batches_tracked

    return out3.reshape(n, c, h, w), new_running_mean, new_running_var, new_nbt


# --------------------------------------------------------------------------
# Self-test
# --------------------------------------------------------------------------

def _reference_train(x, weight, bias, running_mean, running_var, eps, momentum):
    xf = x.astype(jnp.float32)
    mean = jnp.mean(xf, axis=(0, 2, 3), keepdims=True)
    var = jnp.mean((xf - mean) ** 2, axis=(0, 2, 3), keepdims=True)  # correction=0
    out = (weight[None, :, None, None] * (xf - mean) / jnp.sqrt(var + eps)
           + bias[None, :, None, None])
    c = x.shape[1]
    rm = (1.0 - momentum) * running_mean + momentum * mean.reshape(c)
    rv = (1.0 - momentum) * running_var + momentum * var.reshape(c)
    return out, rm, rv


if __name__ == "__main__":
    key = jax.random.PRNGKey(0)
    eps, momentum = 1e-5, 0.1
    tol = 1e-4

    # ---- primary shape: (2, 4, 16, 16) f32 --------------------------------
    N, C, H, W = 2, 4, 16, 16
    kx, kw, kb, kx2, kx3 = jax.random.split(key, 5)
    x = jax.random.normal(kx, (N, C, H, W), dtype=jnp.float32) * 1.7 + 0.4
    weight = 1.0 + 0.1 * jax.random.normal(kw, (C,), dtype=jnp.float32)
    bias = 0.1 * jax.random.normal(kb, (C,), dtype=jnp.float32)
    running_mean = jnp.zeros((C,), dtype=jnp.float32)
    running_var = jnp.ones((C,), dtype=jnp.float32)
    nbt = jnp.array(0, dtype=jnp.int32)

    ref_out, ref_rm, ref_rv = _reference_train(
        x, weight, bias, running_mean, running_var, eps, momentum)

    # 1) Training, fused single-pass path.
    out1, rm1, rv1, nbt1 = batchnorm2d_forward(
        x, weight, bias, running_mean, running_var, nbt,
        eps=eps, momentum=momentum, training=True)
    jax.block_until_ready((out1, rm1, rv1, nbt1))
    assert out1.shape == (N, C, H, W) and out1.dtype == x.dtype
    assert float(jnp.max(jnp.abs(out1 - ref_out))) < tol
    assert float(jnp.max(jnp.abs(rm1 - ref_rm))) < tol
    assert float(jnp.max(jnp.abs(rv1 - ref_rv))) < tol

    # 2) Training, forced gridded two-pass path (batch + spatial reduction grid).
    out2, rm2, rv2, _ = batchnorm2d_forward(
        x, weight, bias, running_mean, running_var, nbt,
        eps=eps, momentum=momentum, training=True,
        fused_slab_bytes=0, block_target_bytes=2048)
    jax.block_until_ready((out2, rm2, rv2))
    assert float(jnp.max(jnp.abs(out2 - ref_out))) < tol
    assert float(jnp.max(jnp.abs(rm2 - ref_rm))) < tol
    assert float(jnp.max(jnp.abs(rv2 - ref_rv))) < tol

    # 3) Eval mode: normalize with the updated running statistics.
    out3, rm3, rv3, nbt3 = batchnorm2d_forward(
        x, weight, bias, rm1, rv1, nbt1,
        eps=eps, momentum=momentum, training=False)
    jax.block_until_ready(out3)
    ref_eval = (weight[None, :, None, None]
                * (x - rm1[None, :, None, None])
                / jnp.sqrt(rv1[None, :, None, None] + eps)
                + bias[None, :, None, None])
    assert float(jnp.max(jnp.abs(out3 - ref_eval))) < tol
    assert int(nbt1) == 1 and int(nbt3) == 1
    assert float(jnp.max(jnp.abs(rm3 - rm1))) == 0.0  # eval must not touch stats

    # 4) Ragged spatial size (H*W not a multiple of 128), forced gridded path
    #    -> exercises the cdiv grid + lane-masked stats accumulation.
    Cr = 8
    xr = jax.random.normal(kx2, (2, Cr, 15, 15), dtype=jnp.float32) * 0.9 - 1.3
    wr = 1.0 + 0.05 * jax.random.normal(kw, (Cr,), dtype=jnp.float32)
    br = 0.05 * jax.random.normal(kb, (Cr,), dtype=jnp.float32)
    ref_out_r, ref_rm_r, ref_rv_r = _reference_train(
        xr, wr, br, jnp.zeros((Cr,), jnp.float32), jnp.ones((Cr,), jnp.float32),
        eps, momentum)
    out4, rm4, rv4, _ = batchnorm2d_forward(
        xr, wr, br, jnp.zeros((Cr,), jnp.float32), jnp.ones((Cr,), jnp.float32),
        jnp.array(0, jnp.int32), eps=eps, momentum=momentum, training=True,
        fused_slab_bytes=0, block_target_bytes=2048)
    jax.block_until_ready((out4, rm4, rv4))
    assert float(jnp.max(jnp.abs(out4 - ref_out_r))) < tol
    assert float(jnp.max(jnp.abs(rm4 - ref_rm_r))) < tol
    assert float(jnp.max(jnp.abs(rv4 - ref_rv_r))) < tol

    # 5) bf16 input, fused path (dtype-aware sublane quantum = 16).
    Cb = 16
    xb = (jax.random.normal(kx3, (2, Cb, 8, 16), dtype=jnp.float32) * 1.5
          + 0.2).astype(jnp.bfloat16)
    wbf = 1.0 + 0.1 * jax.random.normal(kw, (Cb,), dtype=jnp.float32)
    bbf = 0.1 * jax.random.normal(kb, (Cb,), dtype=jnp.float32)
    ref_out_b, ref_rm_b, ref_rv_b = _reference_train(
        xb, wbf, bbf, jnp.zeros((Cb,), jnp.float32), jnp.ones((Cb,), jnp.float32),
        eps, momentum)
    out5, rm5, rv5, _ = batchnorm2d_forward(
        xb, wbf, bbf, jnp.zeros((Cb,), jnp.float32), jnp.ones((Cb,), jnp.float32),
        jnp.array(0, jnp.int32), eps=eps, momentum=momentum, training=True)
    jax.block_until_ready((out5, rm5, rv5))
    assert out5.dtype == jnp.bfloat16
    assert float(jnp.max(jnp.abs(out5.astype(jnp.float32) - ref_out_b))) < 5e-2
    assert float(jnp.max(jnp.abs(rm5 - ref_rm_b))) < 1e-3
    assert float(jnp.max(jnp.abs(rv5 - ref_rv_b))) < 1e-3

    print("KERNEL_OK")
</pallas_src>

<mosaic_0001>
module attributes {stable_mosaic.version = 11 : i64} {
  func.func @_bn_fused_kernel(%arg0: i32, %arg1: memref<2x4x256xf32, #tpu.memory_space<vmem>>, %arg2: memref<4x1xf32, #tpu.memory_space<vmem>>, %arg3: memref<4x1xf32, #tpu.memory_space<vmem>>, %arg4: memref<4x1xf32, #tpu.memory_space<vmem>>, %arg5: memref<2x4x256xf32, #tpu.memory_space<vmem>>, %arg6: memref<4x1xf32, #tpu.memory_space<vmem>>, %arg7: memref<4x1xf32, #tpu.memory_space<vmem>>) attributes {dimension_semantics = [#tpu.dimension_semantics<parallel>], iteration_bounds = array<i64: 1>, scalar_prefetch = 0 : i64, scratch_operands = 0 : i64, tpu.core_type = #tpu.core_type<tc>, window_params = [{transform_indices = @transform_0, window_bounds = array<i64: 2, 4, 256>}, {transform_indices = @transform_1, window_bounds = array<i64: 4, 1>}, {transform_indices = @transform_2, window_bounds = array<i64: 4, 1>}, {transform_indices = @transform_3, window_bounds = array<i64: 4, 1>}, {transform_indices = @transform_4, window_bounds = array<i64: 2, 4, 256>}, {transform_indices = @transform_5, window_bounds = array<i64: 4, 1>}, {transform_indices = @transform_6, window_bounds = array<i64: 4, 1>}]} {
    %c0 = arith.constant 0 : index
    %c0_0 = arith.constant 0 : index
    %0 = vector.load %arg4[%c0, %c0_0] : memref<4x1xf32, #tpu.memory_space<vmem>>, vector<4x1xf32>
    %cst = arith.constant 0.000000e+00 : f32
    %1 = vector.broadcast %cst : f32 to vector<4x1xf32>
    %c0_i32 = arith.constant 0 : i32
    %2 = arith.index_cast %c0_i32 : i32 to index
    %c0_1 = arith.constant 0 : index
    %c0_2 = arith.constant 0 : index
    %3 = vector.load %arg1[%2, %c0_1, %c0_2] : memref<2x4x256xf32, #tpu.memory_space<vmem>>, vector<1x4x256xf32>
    %4 = vector.shape_cast %3 : vector<1x4x256xf32> to vector<4x256xf32>
    %5 = vector.broadcast %0 : vector<4x1xf32> to vector<4x256xf32>
    %6 = arith.subf %4, %5 : vector<4x256xf32>
    %cst_3 = arith.constant dense<0.000000e+00> : vector<4xf32>
    %7 = vector.multi_reduction <add>, %6, %cst_3 [1] : vector<4x256xf32> to vector<4xf32>
    %8 = vector.shape_cast %7 : vector<4xf32> to vector<4x1xf32>
    %9 = arith.addf %1, %8 : vector<4x1xf32>
    %10 = arith.mulf %6, %6 : vector<4x256xf32>
    %cst_4 = arith.constant dense<0.000000e+00> : vector<4xf32>
    %11 = vector.multi_reduction <add>, %10, %cst_4 [1] : vector<4x256xf32> to vector<4xf32>
    %12 = vector.shape_cast %11 : vector<4xf32> to vector<4x1xf32>
    %13 = arith.addf %1, %12 : vector<4x1xf32>
    %c1_i32 = arith.constant 1 : i32
    %14 = arith.index_cast %c1_i32 : i32 to index
    %c0_5 = arith.constant 0 : index
    %c0_6 = arith.constant 0 : index
    %15 = vector.load %arg1[%14, %c0_5, %c0_6] : memref<2x4x256xf32, #tpu.memory_space<vmem>>, vector<1x4x256xf32>
    %16 = vector.shape_cast %15 : vector<1x4x256xf32> to vector<4x256xf32>
    %17 = vector.broadcast %0 : vector<4x1xf32> to vector<4x256xf32>
    %18 = arith.subf %16, %17 : vector<4x256xf32>
    %cst_7 = arith.constant dense<0.000000e+00> : vector<4xf32>
    %19 = vector.multi_reduction <add>, %18, %cst_7 [1] : vector<4x256xf32> to vector<4xf32>
    %20 = vector.shape_cast %19 : vector<4xf32> to vector<4x1xf32>
    %21 = arith.addf %9, %20 : vector<4x1xf32>
    %22 = arith.mulf %18, %18 : vector<4x256xf32>
    %cst_8 = arith.constant dense<0.000000e+00> : vector<4xf32>
    %23 = vector.multi_reduction <add>, %22, %cst_8 [1] : vector<4x256xf32> to vector<4xf32>
    %24 = vector.shape_cast %23 : vector<4xf32> to vector<4x1xf32>
    %25 = arith.addf %13, %24 : vector<4x1xf32>
    %c2_i32 = arith.constant 2 : i32
    %cst_9 = arith.constant 0.001953125 : f32
    %26 = vector.broadcast %cst_9 : f32 to vector<4x1xf32>
    %27 = arith.mulf %21, %26 : vector<4x1xf32>
    %28 = arith.addf %0, %27 : vector<4x1xf32>
    %cst_10 = arith.constant 0.001953125 : f32
    %29 = vector.broadcast %cst_10 : f32 to vector<4x1xf32>
    %30 = arith.mulf %25, %29 : vector<4x1xf32>
    %31 = arith.mulf %27, %27 : vector<4x1xf32>
    %32 = arith.subf %30, %31 : vector<4x1xf32>
    %cst_11 = arith.constant 0.000000e+00 : f32
    %33 = vector.broadcast %cst_11 : f32 to vector<4x1xf32>
    %34 = arith.maximumf %32, %33 : vector<4x1xf32>
    %cst_12 = arith.constant 9.99999974E-6 : f32
    %35 = vector.broadcast %cst_12 : f32 to vector<4x1xf32>
    %36 = arith.addf %34, %35 : vector<4x1xf32>
    %37 = math.rsqrt %36 : vector<4x1xf32>
    %c0_13 = arith.constant 0 : index
    %c0_14 = arith.constant 0 : index
    %38 = vector.load %arg2[%c0_13, %c0_14] : memref<4x1xf32, #tpu.memory_space<vmem>>, vector<4x1xf32>
    %39 = arith.mulf %38, %37 : vector<4x1xf32>
    %c0_15 = arith.constant 0 : index
    %c0_16 = arith.constant 0 : index
    %40 = vector.load %arg3[%c0_15, %c0_16] : memref<4x1xf32, #tpu.memory_space<vmem>>, vector<4x1xf32>
    %41 = arith.mulf %28, %39 : vector<4x1xf32>
    %42 = arith.subf %40, %41 : vector<4x1xf32>
    %c0_i32_17 = arith.constant 0 : i32
    %43 = arith.index_cast %c0_i32_17 : i32 to index
    %c0_18 = arith.constant 0 : index
    %c0_19 = arith.constant 0 : index
    %44 = vector.load %arg1[%43, %c0_18, %c0_19] : memref<2x4x256xf32, #tpu.memory_space<vmem>>, vector<1x4x256xf32>
    %45 = vector.shape_cast %44 : vector<1x4x256xf32> to vector<4x256xf32>
    %46 = vector.broadcast %39 : vector<4x1xf32> to vector<4x256xf32>
    %47 = arith.mulf %45, %46 : vector<4x256xf32>
    %48 = vector.broadcast %42 : vector<4x1xf32> to vector<4x256xf32>
    %49 = arith.addf %47, %48 : vector<4x256xf32>
    %50 = arith.index_cast %c0_i32_17 : i32 to index
    %c0_20 = arith.constant 0 : index
    %c0_21 = arith.constant 0 : index
    %51 = vector.load %arg5[%50, %c0_20, %c0_21] : memref<2x4x256xf32, #tpu.memory_space<vmem>>, vector<1x4x256xf32>
    %52 = vector.shape_cast %51 : vector<1x4x256xf32> to vector<4x256xf32>
    %53 = vector.shape_cast %49 : vector<4x256xf32> to vector<1x4x256xf32>
    tpu.vector_store %arg5[%50, %c0_20, %c0_21], %53 {strides = array<i32>} : memref<2x4x256xf32, #tpu.memory_space<vmem>>, vector<1x4x256xf32>,
    %c1_i32_22 = arith.constant 1 : i32
    %54 = arith.index_cast %c1_i32_22 : i32 to index
    %c0_23 = arith.constant 0 : index
    %c0_24 = arith.constant 0 : index
    %55 = vector.load %arg1[%54, %c0_23, %c0_24] : memref<2x4x256xf32, #tpu.memory_space<vmem>>, vector<1x4x256xf32>
    %56 = vector.shape_cast %55 : vector<1x4x256xf32> to vector<4x256xf32>
    %57 = vector.broadcast %39 : vector<4x1xf32> to vector<4x256xf32>
    %58 = arith.mulf %56, %57 : vector<4x256xf32>
    %59 = vector.broadcast %42 : vector<4x1xf32> to vector<4x256xf32>
    %60 = arith.addf %58, %59 : vector<4x256xf32>
    %61 = arith.index_cast %c1_i32_22 : i32 to index
    %c0_25 = arith.constant 0 : index
    %c0_26 = arith.constant 0 : index
    %62 = vector.load %arg5[%61, %c0_25, %c0_26] : memref<2x4x256xf32, #tpu.memory_space<vmem>>, vector<1x4x256xf32>
    %63 = vector.shape_cast %62 : vector<1x4x256xf32> to vector<4x256xf32>
    %64 = vector.shape_cast %60 : vector<4x256xf32> to vector<1x4x256xf32>
    tpu.vector_store %arg5[%61, %c0_25, %c0_26], %64 {strides = array<i32>} : memref<2x4x256xf32, #tpu.memory_space<vmem>>, vector<1x4x256xf32>,
    %c2_i32_27 = arith.constant 2 : i32
    %c0_28 = arith.constant 0 : index
    %c0_29 = arith.constant 0 : index
    %65 = vector.load %arg6[%c0_28, %c0_29] : memref<4x1xf32, #tpu.memory_space<vmem>>, vector<4x1xf32>
    tpu.vector_store %arg6[%c0_28, %c0_29], %28 {strides = array<i32>} : memref<4x1xf32, #tpu.memory_space<vmem>>, vector<4x1xf32>,
    %c0_30 = arith.constant 0 : index
    %c0_31 = arith.constant 0 : index
    %66 = vector.load %arg7[%c0_30, %c0_31] : memref<4x1xf32, #tpu.memory_space<vmem>>, vector<4x1xf32>
    tpu.vector_store %arg7[%c0_30, %c0_31], %34 {strides = array<i32>} : memref<4x1xf32, #tpu.memory_space<vmem>>, vector<4x1xf32>,
    return
  }
  func.func @transform_0(%arg0: i32) -> (i32, i32, i32) {
    %c0_i32 = arith.constant 0 : i32
    %c0_i32_0 = arith.constant 0 : i32
    %c0_i32_1 = arith.constant 0 : i32
    return %c0_i32, %arg0, %c0_i32_0 : i32, i32, i32
  }
  func.func @transform_1(%arg0: i32) -> (i32, i32) {
    %c0_i32 = arith.constant 0 : i32
    %c0_i32_0 = arith.constant 0 : i32
    return %arg0, %c0_i32 : i32, i32
  }
  func.func @transform_2(%arg0: i32) -> (i32, i32) {
    %c0_i32 = arith.constant 0 : i32
    %c0_i32_0 = arith.constant 0 : i32
    return %arg0, %c0_i32 : i32, i32
  }
  func.func @transform_3(%arg0: i32) -> (i32, i32) {
    %c0_i32 = arith.constant 0 : i32
    %c0_i32_0 = arith.constant 0 : i32
    return %arg0, %c0_i32 : i32, i32
  }
  func.func @transform_4(%arg0: i32) -> (i32, i32, i32) {
    %c0_i32 = arith.constant 0 : i32
    %c0_i32_0 = arith.constant 0 : i32
    %c0_i32_1 = arith.constant 0 : i32
    return %c0_i32, %arg0, %c0_i32_0 : i32, i32, i32
  }
  func.func @transform_5(%arg0: i32) -> (i32, i32) {
    %c0_i32 = arith.constant 0 : i32
    %c0_i32_0 = arith.constant 0 : i32
    return %arg0, %c0_i32 : i32, i32
  }
  func.func @transform_6(%arg0: i32) -> (i32, i32) {
    %c0_i32 = arith.constant 0 : i32
    %c0_i32_0 = arith.constant 0 : i32
    return %arg0, %c0_i32 : i32, i32
  }
}

</mosaic_0001>

<llo_original>
// kernel: tpu_custom_call.1
$region0: #{tpu_custom_call.1}
  #allocation0 [shape = 'u32[]', space=smem, size = 0x4, offset = 0x4, fixed_abs, tag = 'smem constant byte address 0x4 - core index']
  #allocation1 [shape = 'u32[72,128]{1,0:T(1,128)}', space=vmem, size = 0x9000, scoped, tag = 'internal scratch']
  %s0 = inlined_call_operand.hbm [shape: f32[2,4,256], index: 0, kind: input, shape index: {}]
  %s1 = inlined_call_operand.vmem [shape: f32[4,1], index: 1, kind: input, shape index: {}]
  %s2 = inlined_call_operand.vmem [shape: f32[4,1], index: 2, kind: input, shape index: {}]
  %s3 = inlined_call_operand.vmem [shape: f32[4,1], index: 3, kind: input, shape index: {}]
  %s4 = inlined_call_operand.hbm [shape: f32[2,4,256], index: 4, kind: output, shape index: {0}]
  %s5 = inlined_call_operand.vmem [shape: f32[4,1], index: 5, kind: output, shape index: {1}]
  %s6 = inlined_call_operand.vmem [shape: f32[4,1], index: 6, kind: output, shape index: {2}]
  %7 = xla_tuple %s4, %s5, %s6
  %s8 = sld [smem:[#allocation0]]
  $region46: #{tpu_custom_call.1} parent=0
    _
  %s10 = ssub.s32 1, %s8
  %s11 = scalar_select 0, %s10, %s8
  $region1: #{tpu_custom_call.1} parent=0
    #allocation2 [shape = 'u8[8192]{0}', space=vmem, size = 0x2000, scoped, tag = 'input window, operand 0, single buffered']
    #allocation3 [shape = 's32[1]{0}', space=sflag, size = 0x4, scoped, tag = 'scoped memory for tpu_custom_call.1']
    #allocation4 [shape = 's32[1]{0}', space=sflag, size = 0x4, scoped, tag = 'scoped memory for tpu_custom_call.1']
    #allocation5 [shape = 'u8[8192]{0}', space=vmem, size = 0x2000, scoped, tag = 'output window, operand 0, single buffered']
    %12 = vsyncpa [#allocation3], 0
    %13 = vsyncpa [#allocation4], 0
    // Predicated region
    $region2: #{tpu_custom_call.1} parent=1 // pred_check
      _
    $region3: #{tpu_custom_call.1} parent=1 // pred_check_branch
      %15 = sbr.rel (0) target = $region5
    $region4: #{tpu_custom_call.1} parent=1 // pred_region
      %17 = vsyncadd [#allocation3], 0
      %s18 = sshll.u32 %s0, 4
      %s19 = int_to_ptr.hbm [resolvable:$true] %s18
      %s20 = sshll.u32 [#allocation2], 4
      %s21 = int_to_ptr.vmem [resolvable:$true] %s20
      %26 = dma.hbm_to_vmem [thread:$0]  %s19, 256, %s21, [#allocation3], 128, 128, 8
    $region5: #{tpu_custom_call.1} parent=1 // pred_fallthru
      _
    // Predicated region
    $region6: #{tpu_custom_call.1} parent=1 // pred_check
      _
    $region7: #{tpu_custom_call.1} parent=1 // pred_check_branch
      %28 = sbr.rel (0) target = $region9
    $region8: #{tpu_custom_call.1} parent=1 // pred_region
      _
    $region9: #{tpu_custom_call.1} parent=1 // pred_fallthru
      _
    // Predicated region
    $region10: #{tpu_custom_call.1} parent=1 // pred_check
      _
    $region11: #{tpu_custom_call.1} parent=1 // pred_check_branch
      %30 = sbr.rel (0) target = $region13
    $region12: #{tpu_custom_call.1} parent=1 // pred_region
      _
    $region13: #{tpu_custom_call.1} parent=1 // pred_fallthru
      _
    // Predicated region
    $region14: #{tpu_custom_call.1} parent=1 // pred_check
      _
    $region15: #{tpu_custom_call.1} parent=1 // pred_check_branch
      %32 = sbr.rel (0) target = $region17
    $region16: #{tpu_custom_call.1} parent=1 // pred_region
      _
    $region17: #{tpu_custom_call.1} parent=1 // pred_fallthru
      _
    // Predicated region
    $region18: #{tpu_custom_call.1} parent=1 // pred_check
      _
    $region19: #{tpu_custom_call.1} parent=1 // pred_check_branch
      %34 = sbr.rel (0) target = $region21
    $region20: #{tpu_custom_call.1} parent=1 // pred_region
      %36 = dma.done [#allocation3], 256
    $region21: #{tpu_custom_call.1} parent=1 // pred_fallthru
      _
    %v37 = vld [vmem:[%s3] sm:$0xf]
    %v38 = vld [vmem:[#allocation2] sm:$0xff]
    %40 = vset.pattern.permute.xlu0 0
    %41 = vperm.xlu0 %40, %v37
    %v42 = vpop.permute.xlu0 %41
    %v44 = vunpack.c.l.s4 839922192
    %v45 = vunpack.c.0.s8 %v44
    %v46 = vperm.slane %v42, %v45
    %v48 = vsub.f32 %v38, %v46
    %50 = vst [vmem:[#allocation1] ss:$2 sm:$0xff] %v48
    %v51 = vld.sshfl [vmem:[#allocation1] sm:$0xff pattern:$0x75316420]
    %v52 = vld.sshfl [vmem:[#allocation1 + $0x8] sm:$0xff pattern:$0x75316420]
    %vm55 = vcmask 1043456
    %v56 = vsel %vm55, %v51, 0.0
    %v57 = vsel %vm55, %v52, 0.0
    %v58 = vadd.f32 %v56, %v57
    %59 = vadd.xlane.f32.xlu0 %v58
    %v60 = vpop.xlane.xlu0 %59
    %v61 = vadd.f32 %v60, 0.0
    %v62 = vmul.f32 %v48, %v48
    %64 = vst [vmem:[#allocation1] ss:$2 sm:$0xff] %v62
    %v65 = vld.sshfl [vmem:[#allocation1] sm:$0xff pattern:$0x75316420]
    %v66 = vld.sshfl [vmem:[#allocation1 + $0x8] sm:$0xff pattern:$0x75316420]
    %v69 = vsel %vm55, %v65, 0.0
    %v70 = vsel %vm55, %v66, 0.0
    %v71 = vadd.f32 %v69, %v70
    %72 = vadd.xlane.f32.xlu0 %v71
    %v73 = vpop.xlane.xlu0 %72
    %v74 = vadd.f32 %v73, 0.0
    %s75 = scalar_lea.vmem [#allocation2], 8
    %v76 = vld [vmem:[%s75] sm:$0xff]
    %v77 = vsub.f32 %v76, %v46
    %79 = vst [vmem:[#allocation1] ss:$2 sm:$0xff] %v77
    %v80 = vld.sshfl [vmem:[#allocation1] sm:$0xff pattern:$0x75316420]
    %v81 = vld.sshfl [vmem:[#allocation1 + $0x8] sm:$0xff pattern:$0x75316420]
    %v84 = vsel %vm55, %v80, 0.0
    %v85 = vsel %vm55, %v81, 0.0
    %v86 = vadd.f32 %v84, %v85
    %87 = vadd.xlane.f32.xlu0 %v86
    %v88 = vpop.xlane.xlu0 %87
    %v89 = vadd.f32 %v61, %v88
    %v90 = vmul.f32 %v77, %v77
    %92 = vst [vmem:[#allocation1] ss:$2 sm:$0xff] %v90
    %v93 = vld.sshfl [vmem:[#allocation1] sm:$0xff pattern:$0x75316420]
    %v94 = vld.sshfl [vmem:[#allocation1 + $0x8] sm:$0xff pattern:$0x75316420]
    %v97 = vsel %vm55, %v93, 0.0
    %v98 = vsel %vm55, %v94, 0.0
    %v99 = vadd.f32 %v97, %v98
    %100 = vadd.xlane.f32.xlu0 %v99
    %v101 = vpop.xlane.xlu0 %100
    %v102 = vadd.f32 %v74, %v101
    %v103 = vmul.f32 %v89, 0.001953125
    %v104 = vadd.f32 %v37, %v103
    %v105 = vmul.f32 %v102, 0.001953125
    %v106 = vmul.f32 %v103, %v103
    %v107 = vsub.f32 %v105, %v106
    %v108 = vmax.f32 %v107, 0.0
    %v109 = vadd.f32 %v108, 1e-05
    %v110 = vrsqrt.pop %v109
    %v111 = vmul.f32 %v110, %v109
    %v112 = vmul.f32 %v111, %v110
    %v113 = vmul.f32 0.5, %v112
    %v114 = vsub.f32 1.5, %v113
    %v115 = vmul.f32 %v110, %v114
    %vm116 = vweird.f32 %v109
    %vm117 = vweird.f32 %v110
    %vm118 = vmor %vm116, %vm117
    %v119 = vsel %vm118, %v110, %v115
    %v120 = vld [vmem:[%s1] sm:$0xf]
    %v121 = vmul.f32 %v120, %v119
    %v122 = vld [vmem:[%s2] sm:$0xf]
    %v123 = vmul.f32 %v104, %v121
    %v124 = vsub.f32 %v122, %v123
    %126 = vset.pattern.permute.xlu0 0
    %127 = vperm.xlu0 %126, %v121
    %v128 = vpop.permute.xlu0 %127
    %v130 = vunpack.c.l.s4 839922192
    %v131 = vunpack.c.0.s8 %v130
    %v132 = vperm.slane %v128, %v131
    %v134 = vmul.f32 %v38, %v132
    %136 = vset.pattern.permute.xlu0 0
    %137 = vperm.xlu0 %136, %v124
    %v138 = vpop.permute.xlu0 %137
    %v140 = vunpack.c.l.s4 839922192
    %v141 = vunpack.c.0.s8 %v140
    %v142 = vperm.slane %v138, %v141
    %v144 = vadd.f32 %v134, %v142
    %145 = vst [vmem:[#allocation5] sm:$0xff] %v144
    %v146 = vld [vmem:[%s75] sm:$0xff]
    %v147 = vmul.f32 %v146, %v132
    %v148 = vadd.f32 %v147, %v142
    %s149 = scalar_lea.vmem [#allocation5], 8
    %150 = vst [vmem:[%s149] sm:$0xff] %v148
    %vm151 = vcmask 3072
    %152 = vst.msk [vmem:[%s5] sm:$0xf] %vm151, %v104
    %153 = vst.msk [vmem:[%s6] sm:$0xf] %vm151, %v108
    // Predicated region
    $region22: #{tpu_custom_call.1} parent=1 // pred_check
      _
    $region23: #{tpu_custom_call.1} parent=1 // pred_check_branch
      %155 = sbr.rel (0) target = $region25
    $region24: #{tpu_custom_call.1} parent=1 // pred_region
      %157 = vsyncadd [#allocation4], 0
      %s158 = sshll.u32 [#allocation5], 4
      %s159 = int_to_ptr.vmem [resolvable:$true] %s158
      %s160 = sshll.u32 %s4, 4
      %s161 = int_to_ptr.hbm [resolvable:$true] %s160
      %166 = dma.vmem_to_hbm [thread:$0]  %s159, 256, %s161, [#allocation4], 128, 128, 8
    $region25: #{tpu_custom_call.1} parent=1 // pred_fallthru
      _
    // Predicated region
    $region26: #{tpu_custom_call.1} parent=1 // pred_check
      _
    $region27: #{tpu_custom_call.1} parent=1 // pred_check_branch
      %168 = sbr.rel (0) target = $region29
    $region28: #{tpu_custom_call.1} parent=1 // pred_region
      _
    $region29: #{tpu_custom_call.1} parent=1 // pred_fallthru
      _
    // Predicated region
    $region30: #{tpu_custom_call.1} parent=1 // pred_check
      _
    $region31: #{tpu_custom_call.1} parent=1 // pred_check_branch
      %170 = sbr.rel (0) target = $region33
    $region32: #{tpu_custom_call.1} parent=1 // pred_region
      _
    $region33: #{tpu_custom_call.1} parent=1 // pred_fallthru
      _
    // Predicated region
    $region34: #{tpu_custom_call.1} parent=1 // pred_check
      _
    $region35: #{tpu_custom_call.1} parent=1 // pred_check_branch
      %172 = sbr.rel (0) target = $region37
    $region36: #{tpu_custom_call.1} parent=1 // pred_region
      %174 = dma.done [#allocation4], 256
    $region37: #{tpu_custom_call.1} parent=1 // pred_fallthru
      _
    // Predicated region
    $region38: #{tpu_custom_call.1} parent=1 // pred_check
      _
    $region39: #{tpu_custom_call.1} parent=1 // pred_check_branch
      %176 = sbr.rel (0) target = $region41
    $region40: #{tpu_custom_call.1} parent=1 // pred_region
      _
    $region41: #{tpu_custom_call.1} parent=1 // pred_fallthru
      _
    // Predicated region
    $region42: #{tpu_custom_call.1} parent=1 // pred_check
      _
    $region43: #{tpu_custom_call.1} parent=1 // pred_check_branch
      %178 = sbr.rel (0) target = $region45
    $region44: #{tpu_custom_call.1} parent=1 // pred_region
      _
    $region45: #{tpu_custom_call.1} parent=1 // pred_fallthru
      _
    %179 = vsyncpa [#allocation3], 1
    %180 = vsyncpa [#allocation4], 1

</llo_original>
